<compile_context>
chip_gen: v6e
topology: v6e:2x2x1
jax: 0.10.0
libtpu: 0.0.40
codegen_flags: <defaults>
</compile_context>

<pallas_src>
import math

import jax
import jax.numpy as jnp
import numpy as np
from jax.experimental import pallas as pl
from jax.experimental.pallas import tpu as pltpu


def _mhsa_kernel(v_ref, k_ref, q_ref, wv_ref, wk_ref, wq_ref, wo_ref, bo_ref,
                 out_ref, attn_ref, acc_ref):
    # v/k refs: (1, 1, S_k, Hd); q ref: (1, 1, TQ, Hd); wo ref: (1, Hd, E);
    # out block (1, TQ, E) is resident across the head axis; acc is f32 scratch.
    h = pl.program_id(2)
    last_h = pl.num_programs(2) - 1

    @pl.when(h == 0)
    def _():
        acc_ref[...] = jnp.zeros_like(acc_ref)

    bf16 = jnp.bfloat16
    f32 = jnp.float32

    # Single-head slabs; bf16 MXU operands, f32 accumulation everywhere.
    q = q_ref[0, 0].astype(bf16)   # (TQ,  Hd)
    k = k_ref[0, 0].astype(bf16)   # (S_k, Hd)
    v = v_ref[0, 0].astype(bf16)   # (S_v, Hd)

    # Per-head projections (W_q pre-scaled by 1/sqrt(embed) in the wrapper).
    qh = jnp.dot(q, wq_ref[...].astype(bf16), preferred_element_type=f32).astype(bf16)
    kh = jnp.dot(k, wk_ref[...].astype(bf16), preferred_element_type=f32).astype(bf16)
    vh = jnp.dot(v, wv_ref[...].astype(bf16), preferred_element_type=f32).astype(bf16)
    # TODO(synk): nn.Dropout on the projected keys is train-time randomness;
    # this kernel implements the eval forward where dropout is identity.

    # energy = qh @ kh^T  (contract head_dim without materialising kh^T).
    energy = jax.lax.dot_general(
        qh, kh, (((1,), (1,)), ((), ())), preferred_element_type=f32)   # (TQ, S_k)
    # TODO(synk): optional `mask` argument (masked_fill with -1e20) is not
    # implemented; only the mask=None path of the PyTorch forward is supported.

    # Numerically stable softmax over keys; EUP-friendly approx reciprocal on
    # the (TQ, 1) row sums instead of a full-slab divide.
    m = jnp.max(energy, axis=-1, keepdims=True)
    p = jnp.exp(energy - m)
    l = jnp.sum(p, axis=-1, keepdims=True)
    attn = p * pl.reciprocal(l, approx=True)                            # (TQ, S_k)

    # Lane-dense (TQ, S_k) slab store of this head's attention map.
    attn_ref[0, 0] = attn.astype(attn_ref.dtype)

    # ctx_h = attn @ vh ; fold fc_out:  acc += ctx_h @ W_o^T[h*Hd:(h+1)*Hd, :]
    ctx = jnp.dot(attn.astype(bf16), vh, preferred_element_type=f32)    # (TQ, Hd)
    acc_ref[...] += jnp.dot(ctx.astype(bf16), wo_ref[0].astype(bf16),
                            preferred_element_type=f32)                 # (TQ, E)

    @pl.when(h == last_h)
    def _():
        # Single lane-dense (TQ, E) store of the projected output (+ bias).
        out_ref[0] = (acc_ref[...] + bo_ref[...]).astype(out_ref.dtype)


def _choose_q_tile(s_q, max_tile=256):
    """Largest multiple-of-8 divisor of s_q that is <= max_tile (else full)."""
    if s_q <= max_tile:
        return s_q
    for t in range(max_tile, 7, -1):
        if s_q % t == 0 and t % 8 == 0:
            return t
    return s_q  # fall back to untiled; keeps (8,128) layout constraints valid


def multi_head_self_attention(values, keys, queries,
                              w_values, w_keys, w_queries, w_out, b_out,
                              *, heads, mask=None, attn_dtype=jnp.float32,
                              q_tile=None):
    """Pallas implementation of MultiHeadSelfAttention.forward (eval mode).

    values/keys/queries : (N, len, embed_size)
    w_values/w_keys/w_queries : (head_dim, head_dim) PyTorch Linear weight (out, in)
    w_out : (embed_size, embed_size) PyTorch convention (out, in); b_out : (embed_size,)
    attn_dtype : dtype of the returned attention map (use jnp.bfloat16 to halve
                 the O(H*S^2) HBM writeback when the caller tolerates it).
    Returns (out (N, q_len, embed_size), attention (N, heads, q_len, k_len)).
    """
    assert mask is None, "mask is not supported by this kernel (mask=None path only)"

    N, S_q, E = queries.shape
    S_k = keys.shape[1]
    S_v = values.shape[1]
    H = heads
    assert E % H == 0, "embed_size must be divisible by heads"
    assert S_k == S_v, "key_len must equal value_len"
    Hd = E // H

    TQ = q_tile if q_tile is not None else _choose_q_tile(S_q)
    assert S_q % TQ == 0, "q_tile must divide the query length"
    n_q = S_q // TQ

    # Head-major layout (N, H, S, Hd): pure layout plumbing in the wrapper so
    # every in-kernel head slice is a static, full-width block.
    q4 = jnp.asarray(queries).reshape(N, S_q, H, Hd).transpose(0, 2, 1, 3)
    k4 = jnp.asarray(keys).reshape(N, S_k, H, Hd).transpose(0, 2, 1, 3)
    v4 = jnp.asarray(values).reshape(N, S_v, H, Hd).transpose(0, 2, 1, 3)

    # Pre-transpose weights to (in, out); fold 1/sqrt(embed) into W_q.
    scale = 1.0 / math.sqrt(E)
    wq_t = jnp.asarray(w_queries).T * scale          # (Hd, Hd)
    wk_t = jnp.asarray(w_keys).T                     # (Hd, Hd)
    wv_t = jnp.asarray(w_values).T                   # (Hd, Hd)
    wo_r = jnp.asarray(w_out).T.reshape(H, Hd, E)    # per-head rows of W_out^T
    bo = jnp.asarray(b_out).reshape(1, E)            # (1, E)

    in_isz = jnp.dtype(q4.dtype).itemsize
    out_isz = jnp.dtype(queries.dtype).itemsize
    attn_isz = jnp.dtype(attn_dtype).itemsize
    w_isz = jnp.dtype(wq_t.dtype).itemsize
    in_block = (S_v * Hd + S_k * Hd + TQ * Hd) * in_isz \
        + (3 * Hd * Hd + Hd * E + E) * w_isz
    out_block = TQ * E * out_isz + TQ * S_k * attn_isz
    scratch = TQ * E * 4
    total = 2 * (in_block + out_block) + scratch       # x2: double buffering
    vmem_limit = int(min(max(total + (4 << 20), 16 << 20), 48 << 20))

    out_shape = (
        jax.ShapeDtypeStruct((N, S_q, E), queries.dtype),
        jax.ShapeDtypeStruct((N, H, S_q, S_k), attn_dtype),
    )

    return pl.pallas_call(
        _mhsa_kernel,
        out_shape=out_shape,
        grid=(N, n_q, H),
        in_specs=[
            pl.BlockSpec((1, 1, S_v, Hd), lambda b, qi, h: (b, h, 0, 0)),   # values
            pl.BlockSpec((1, 1, S_k, Hd), lambda b, qi, h: (b, h, 0, 0)),   # keys
            pl.BlockSpec((1, 1, TQ, Hd), lambda b, qi, h: (b, h, qi, 0)),   # queries
            pl.BlockSpec((Hd, Hd), lambda b, qi, h: (0, 0)),                # W_v^T
            pl.BlockSpec((Hd, Hd), lambda b, qi, h: (0, 0)),                # W_k^T
            pl.BlockSpec((Hd, Hd), lambda b, qi, h: (0, 0)),                # W_q^T*scale
            pl.BlockSpec((1, Hd, E), lambda b, qi, h: (h, 0, 0)),           # W_out^T rows
            pl.BlockSpec((1, E), lambda b, qi, h: (0, 0)),                  # b_out
        ],
        out_specs=(
            pl.BlockSpec((1, TQ, E), lambda b, qi, h: (b, qi, 0)),          # out
            pl.BlockSpec((1, 1, TQ, S_k), lambda b, qi, h: (b, h, qi, 0)),  # attention
        ),
        scratch_shapes=[pltpu.VMEM((TQ, E), jnp.float32)],
        compiler_params=pltpu.CompilerParams(
            dimension_semantics=("parallel", "parallel", "arbitrary"),
            vmem_limit_bytes=vmem_limit,
        ),
    )(v4, k4, q4, wv_t, wk_t, wq_t, wo_r, bo)


def _reference(values, keys, queries, w_values, w_keys, w_queries, w_out, b_out, heads):
    """Pure-numpy replica of the PyTorch forward (eval mode, mask=None)."""
    N, S_q, E = queries.shape
    Hd = E // heads
    v4 = values.reshape(N, -1, heads, Hd)
    k4 = keys.reshape(N, -1, heads, Hd)
    q4 = queries.reshape(N, -1, heads, Hd)
    # torch.nn.Linear: y = x @ W^T with W stored (out, in)
    v4 = np.einsum('nshd,ed->nshe', v4, w_values)
    k4 = np.einsum('nshd,ed->nshe', k4, w_keys)
    q4 = np.einsum('nshd,ed->nshe', q4, w_queries)
    energy = np.einsum('nqhd,nkhd->nhqk', q4, k4) / np.sqrt(E)
    m = energy.max(axis=-1, keepdims=True)
    p = np.exp(energy - m)
    attn = p / p.sum(axis=-1, keepdims=True)
    ctx = np.einsum('nhql,nlhd->nqhd', attn, v4).reshape(N, S_q, E)
    out = ctx @ w_out.T + b_out
    return out, attn


if __name__ == "__main__":
    # Small shapes consistent with the module: batch=2, seq=8, embed=32, heads=4
    B, S, E, H = 2, 8, 32, 4
    Hd = E // H

    key = jax.random.PRNGKey(0)
    kv, kk, kq, kwv, kwk, kwq, kwo, kbo = jax.random.split(key, 8)
    values = jax.random.normal(kv, (B, S, E), dtype=jnp.float32)
    keys = jax.random.normal(kk, (B, S, E), dtype=jnp.float32)
    queries = jax.random.normal(kq, (B, S, E), dtype=jnp.float32)
    w_values = jax.random.normal(kwv, (Hd, Hd), dtype=jnp.float32) * 0.1
    w_keys = jax.random.normal(kwk, (Hd, Hd), dtype=jnp.float32) * 0.1
    w_queries = jax.random.normal(kwq, (Hd, Hd), dtype=jnp.float32) * 0.1
    w_out = jax.random.normal(kwo, (E, E), dtype=jnp.float32) * 0.1
    b_out = jax.random.normal(kbo, (E,), dtype=jnp.float32) * 0.1

    out, attn = multi_head_self_attention(
        values, keys, queries, w_values, w_keys, w_queries, w_out, b_out, heads=H)
    out = jax.block_until_ready(out)
    attn = jax.block_until_ready(attn)

    out_ref, attn_ref = _reference(
        np.asarray(values), np.asarray(keys), np.asarray(queries),
        np.asarray(w_values), np.asarray(w_keys), np.asarray(w_queries),
        np.asarray(w_out), np.asarray(b_out), H)

    assert out.shape == out_ref.shape, (out.shape, out_ref.shape)
    assert attn.shape == attn_ref.shape, (attn.shape, attn_ref.shape)
    # bf16 MXU operands + approx reciprocal -> bf16-level tolerances vs f32 ref.
    np.testing.assert_allclose(np.asarray(out, np.float32), out_ref, rtol=2e-2, atol=2e-2)
    np.testing.assert_allclose(np.asarray(attn, np.float32), attn_ref, rtol=2e-2, atol=2e-2)

    print("KERNEL_OK")
</pallas_src>

<mosaic_0001>
module attributes {stable_mosaic.version = 11 : i64} {
  func.func @_mhsa_kernel(%arg0: i32, %arg1: i32, %arg2: i32, %arg3: memref<1x1x8x8xf32, #tpu.memory_space<vmem>>, %arg4: memref<1x1x8x8xf32, #tpu.memory_space<vmem>>, %arg5: memref<1x1x8x8xf32, #tpu.memory_space<vmem>>, %arg6: memref<8x8xf32, #tpu.memory_space<vmem>>, %arg7: memref<8x8xf32, #tpu.memory_space<vmem>>, %arg8: memref<8x8xf32, #tpu.memory_space<vmem>>, %arg9: memref<1x8x32xf32, #tpu.memory_space<vmem>>, %arg10: memref<1x32xf32, #tpu.memory_space<vmem>>, %arg11: memref<1x8x32xf32, #tpu.memory_space<vmem>>, %arg12: memref<1x1x8x8xf32, #tpu.memory_space<vmem>>, %arg13: memref<8x32xf32, #tpu.memory_space<vmem>>) attributes {dimension_semantics = [#tpu.dimension_semantics<parallel>, #tpu.dimension_semantics<parallel>, #tpu.dimension_semantics<arbitrary>], iteration_bounds = array<i64: 2, 1, 4>, scalar_prefetch = 0 : i64, scratch_operands = 1 : i64, tpu.core_type = #tpu.core_type<tc>, window_params = [{transform_indices = @transform_0, window_bounds = array<i64: 1, 1, 8, 8>}, {transform_indices = @transform_1, window_bounds = array<i64: 1, 1, 8, 8>}, {transform_indices = @transform_2, window_bounds = array<i64: 1, 1, 8, 8>}, {pipeline_mode = #tpu.pipeline_mode<synchronous>, transform_indices = @transform_3, window_bounds = array<i64: 8, 8>}, {pipeline_mode = #tpu.pipeline_mode<synchronous>, transform_indices = @transform_4, window_bounds = array<i64: 8, 8>}, {pipeline_mode = #tpu.pipeline_mode<synchronous>, transform_indices = @transform_5, window_bounds = array<i64: 8, 8>}, {transform_indices = @transform_6, window_bounds = array<i64: 1, 8, 32>}, {pipeline_mode = #tpu.pipeline_mode<synchronous>, transform_indices = @transform_7, window_bounds = array<i64: 1, 32>}, {transform_indices = @transform_8, window_bounds = array<i64: 1, 8, 32>}, {transform_indices = @transform_9, window_bounds = array<i64: 1, 1, 8, 8>}]} {
    %c0_i32 = arith.constant 0 : i32
    %0 = arith.cmpi eq, %arg2, %c0_i32 : i32
    %1 = arith.extui %0 : i1 to i32
    %c0_i32_0 = arith.constant 0 : i32
    %2 = arith.cmpi ne, %1, %c0_i32_0 : i32
    scf.if %2 {
      %cst_37 = arith.constant 0.000000e+00 : f32
      %51 = vector.broadcast %cst_37 : f32 to vector<8x32xf32>
      %c0_38 = arith.constant 0 : index
      %c0_39 = arith.constant 0 : index
      %52 = vector.load %arg13[%c0_38, %c0_39] : memref<8x32xf32, #tpu.memory_space<vmem>>, vector<8x32xf32>
      tpu.vector_store %arg13[%c0_38, %c0_39], %51 {strides = array<i32>} : memref<8x32xf32, #tpu.memory_space<vmem>>, vector<8x32xf32>,
    } else {
    }
    %c0 = arith.constant 0 : index
    %c0_1 = arith.constant 0 : index
    %c0_2 = arith.constant 0 : index
    %c0_3 = arith.constant 0 : index
    %3 = vector.load %arg5[%c0, %c0_1, %c0_2, %c0_3] : memref<1x1x8x8xf32, #tpu.memory_space<vmem>>, vector<1x1x8x8xf32>
    %4 = vector.shape_cast %3 : vector<1x1x8x8xf32> to vector<8x8xf32>
    %5 = arith.truncf %4 : vector<8x8xf32> to vector<8x8xbf16>
    %c0_4 = arith.constant 0 : index
    %c0_5 = arith.constant 0 : index
    %c0_6 = arith.constant 0 : index
    %c0_7 = arith.constant 0 : index
    %6 = vector.load %arg4[%c0_4, %c0_5, %c0_6, %c0_7] : memref<1x1x8x8xf32, #tpu.memory_space<vmem>>, vector<1x1x8x8xf32>
    %7 = vector.shape_cast %6 : vector<1x1x8x8xf32> to vector<8x8xf32>
    %8 = arith.truncf %7 : vector<8x8xf32> to vector<8x8xbf16>
    %c0_8 = arith.constant 0 : index
    %c0_9 = arith.constant 0 : index
    %c0_10 = arith.constant 0 : index
    %c0_11 = arith.constant 0 : index
    %9 = vector.load %arg3[%c0_8, %c0_9, %c0_10, %c0_11] : memref<1x1x8x8xf32, #tpu.memory_space<vmem>>, vector<1x1x8x8xf32>
    %10 = vector.shape_cast %9 : vector<1x1x8x8xf32> to vector<8x8xf32>
    %11 = arith.truncf %10 : vector<8x8xf32> to vector<8x8xbf16>
    %c0_12 = arith.constant 0 : index
    %c0_13 = arith.constant 0 : index
    %12 = vector.load %arg8[%c0_12, %c0_13] : memref<8x8xf32, #tpu.memory_space<vmem>>, vector<8x8xf32>
    %13 = arith.truncf %12 : vector<8x8xf32> to vector<8x8xbf16>
    %cst = arith.constant dense<0.000000e+00> : vector<8x8xf32>
    %14 = tpu.matmul %5, %13, %cst {dimension_numbers = #tpu.dot_dimension_numbers<[1], [0], [0], [1], [0, 0, 1, 1], [], []>} : vector<8x8xbf16>, vector<8x8xbf16>, vector<8x8xf32> -> vector<8x8xf32>
    %15 = arith.truncf %14 : vector<8x8xf32> to vector<8x8xbf16>
    %c0_14 = arith.constant 0 : index
    %c0_15 = arith.constant 0 : index
    %16 = vector.load %arg7[%c0_14, %c0_15] : memref<8x8xf32, #tpu.memory_space<vmem>>, vector<8x8xf32>
    %17 = arith.truncf %16 : vector<8x8xf32> to vector<8x8xbf16>
    %cst_16 = arith.constant dense<0.000000e+00> : vector<8x8xf32>
    %18 = tpu.matmul %8, %17, %cst_16 {dimension_numbers = #tpu.dot_dimension_numbers<[1], [0], [0], [1], [0, 0, 1, 1], [], []>} : vector<8x8xbf16>, vector<8x8xbf16>, vector<8x8xf32> -> vector<8x8xf32>
    %19 = arith.truncf %18 : vector<8x8xf32> to vector<8x8xbf16>
    %c0_17 = arith.constant 0 : index
    %c0_18 = arith.constant 0 : index
    %20 = vector.load %arg6[%c0_17, %c0_18] : memref<8x8xf32, #tpu.memory_space<vmem>>, vector<8x8xf32>
    %21 = arith.truncf %20 : vector<8x8xf32> to vector<8x8xbf16>
    %cst_19 = arith.constant dense<0.000000e+00> : vector<8x8xf32>
    %22 = tpu.matmul %11, %21, %cst_19 {dimension_numbers = #tpu.dot_dimension_numbers<[1], [0], [0], [1], [0, 0, 1, 1], [], []>} : vector<8x8xbf16>, vector<8x8xbf16>, vector<8x8xf32> -> vector<8x8xf32>
    %23 = arith.truncf %22 : vector<8x8xf32> to vector<8x8xbf16>
    %cst_20 = arith.constant dense<0.000000e+00> : vector<8x8xf32>
    %24 = tpu.matmul %15, %19, %cst_20 {dimension_numbers = #tpu.dot_dimension_numbers<[1], [1], [0], [0], [0, 0, 1, 0], [], []>} : vector<8x8xbf16>, vector<8x8xbf16>, vector<8x8xf32> -> vector<8x8xf32>
    %cst_21 = arith.constant dense<0xFF800000> : vector<8xf32>
    %25 = vector.multi_reduction <maximumf>, %24, %cst_21 [1] : vector<8x8xf32> to vector<8xf32>
    %26 = vector.shape_cast %25 : vector<8xf32> to vector<8x1xf32>
    %27 = vector.broadcast %26 : vector<8x1xf32> to vector<8x8xf32>
    %28 = arith.subf %24, %27 : vector<8x8xf32>
    %29 = math.exp %28 : vector<8x8xf32>
    %cst_22 = arith.constant dense<0.000000e+00> : vector<8xf32>
    %30 = vector.multi_reduction <add>, %29, %cst_22 [1] : vector<8x8xf32> to vector<8xf32>
    %31 = vector.shape_cast %30 : vector<8xf32> to vector<8x1xf32>
    %32 = tpu.reciprocal %31 {approx = true} : vector<8x1xf32> -> vector<8x1xf32>
    %33 = vector.broadcast %32 : vector<8x1xf32> to vector<8x8xf32>
    %34 = arith.mulf %29, %33 : vector<8x8xf32>
    %c0_23 = arith.constant 0 : index
    %c0_24 = arith.constant 0 : index
    %c0_25 = arith.constant 0 : index
    %c0_26 = arith.constant 0 : index
    %35 = vector.load %arg12[%c0_23, %c0_24, %c0_25, %c0_26] : memref<1x1x8x8xf32, #tpu.memory_space<vmem>>, vector<1x1x8x8xf32>
    %36 = vector.shape_cast %35 : vector<1x1x8x8xf32> to vector<8x8xf32>
    %37 = vector.shape_cast %34 : vector<8x8xf32> to vector<1x1x8x8xf32>
    tpu.vector_store %arg12[%c0_23, %c0_24, %c0_25, %c0_26], %37 {strides = array<i32>} : memref<1x1x8x8xf32, #tpu.memory_space<vmem>>, vector<1x1x8x8xf32>,
    %38 = arith.truncf %34 : vector<8x8xf32> to vector<8x8xbf16>
    %cst_27 = arith.constant dense<0.000000e+00> : vector<8x8xf32>
    %39 = tpu.matmul %38, %23, %cst_27 {dimension_numbers = #tpu.dot_dimension_numbers<[1], [0], [0], [1], [0, 0, 1, 1], [], []>} : vector<8x8xbf16>, vector<8x8xbf16>, vector<8x8xf32> -> vector<8x8xf32>
    %c0_28 = arith.constant 0 : index
    %c0_29 = arith.constant 0 : index
    %40 = vector.load %arg13[%c0_28, %c0_29] : memref<8x32xf32, #tpu.memory_space<vmem>>, vector<8x32xf32>
    %41 = arith.truncf %39 : vector<8x8xf32> to vector<8x8xbf16>
    %c0_30 = arith.constant 0 : index
    %c0_31 = arith.constant 0 : index
    %c0_32 = arith.constant 0 : index
    %42 = vector.load %arg9[%c0_30, %c0_31, %c0_32] : memref<1x8x32xf32, #tpu.memory_space<vmem>>, vector<1x8x32xf32>
    %43 = vector.shape_cast %42 : vector<1x8x32xf32> to vector<8x32xf32>
    %44 = arith.truncf %43 : vector<8x32xf32> to vector<8x32xbf16>
    %cst_33 = arith.constant dense<0.000000e+00> : vector<8x32xf32>
    %45 = tpu.matmul %41, %44, %cst_33 {dimension_numbers = #tpu.dot_dimension_numbers<[1], [0], [0], [1], [0, 0, 1, 1], [], []>} : vector<8x8xbf16>, vector<8x32xbf16>, vector<8x32xf32> -> vector<8x32xf32>
    %46 = arith.addf %40, %45 : vector<8x32xf32>
    %c0_34 = arith.constant 0 : index
    %c0_35 = arith.constant 0 : index
    %47 = vector.load %arg13[%c0_34, %c0_35] : memref<8x32xf32, #tpu.memory_space<vmem>>, vector<8x32xf32>
    tpu.vector_store %arg13[%c0_34, %c0_35], %46 {strides = array<i32>} : memref<8x32xf32, #tpu.memory_space<vmem>>, vector<8x32xf32>,
    %c3_i32 = arith.constant 3 : i32
    %48 = arith.cmpi eq, %arg2, %c3_i32 : i32
    %49 = arith.extui %48 : i1 to i32
    %c0_i32_36 = arith.constant 0 : i32
    %50 = arith.cmpi ne, %49, %c0_i32_36 : i32
    scf.if %50 {
      %c0_37 = arith.constant 0 : index
      %c0_38 = arith.constant 0 : index
      %51 = vector.load %arg13[%c0_37, %c0_38] : memref<8x32xf32, #tpu.memory_space<vmem>>, vector<8x32xf32>
      %c0_39 = arith.constant 0 : index
      %c0_40 = arith.constant 0 : index
      %52 = vector.load %arg10[%c0_39, %c0_40] : memref<1x32xf32, #tpu.memory_space<vmem>>, vector<1x32xf32>
      %53 = vector.broadcast %52 : vector<1x32xf32> to vector<8x32xf32>
      %54 = arith.addf %51, %53 : vector<8x32xf32>
      %c0_41 = arith.constant 0 : index
      %c0_42 = arith.constant 0 : index
      %c0_43 = arith.constant 0 : index
      %55 = vector.load %arg11[%c0_41, %c0_42, %c0_43] : memref<1x8x32xf32, #tpu.memory_space<vmem>>, vector<1x8x32xf32>
      %56 = vector.shape_cast %55 : vector<1x8x32xf32> to vector<8x32xf32>
      %57 = vector.shape_cast %54 : vector<8x32xf32> to vector<1x8x32xf32>
      tpu.vector_store %arg11[%c0_41, %c0_42, %c0_43], %57 {strides = array<i32>} : memref<1x8x32xf32, #tpu.memory_space<vmem>>, vector<1x8x32xf32>,
    } else {
    }
    return
  }
  func.func @transform_0(%arg0: i32, %arg1: i32, %arg2: i32) -> (i32, i32, i32, i32) {
    %c0_i32 = arith.constant 0 : i32
    %c0_i32_0 = arith.constant 0 : i32
    %c0_i32_1 = arith.constant 0 : i32
    return %arg0, %arg2, %c0_i32, %c0_i32_0 : i32, i32, i32, i32
  }
  func.func @transform_1(%arg0: i32, %arg1: i32, %arg2: i32) -> (i32, i32, i32, i32) {
    %c0_i32 = arith.constant 0 : i32
    %c0_i32_0 = arith.constant 0 : i32
    %c0_i32_1 = arith.constant 0 : i32
    return %arg0, %arg2, %c0_i32, %c0_i32_0 : i32, i32, i32, i32
  }
  func.func @transform_2(%arg0: i32, %arg1: i32, %arg2: i32) -> (i32, i32, i32, i32) {
    %c0_i32 = arith.constant 0 : i32
    %c0_i32_0 = arith.constant 0 : i32
    return %arg0, %arg2, %arg1, %c0_i32 : i32, i32, i32, i32
  }
  func.func @transform_3(%arg0: i32, %arg1: i32, %arg2: i32) -> (i32, i32) {
    %c0_i32 = arith.constant 0 : i32
    %c0_i32_0 = arith.constant 0 : i32
    %c0_i32_1 = arith.constant 0 : i32
    return %c0_i32, %c0_i32_0 : i32, i32
  }
  func.func @transform_4(%arg0: i32, %arg1: i32, %arg2: i32) -> (i32, i32) {
    %c0_i32 = arith.constant 0 : i32
    %c0_i32_0 = arith.constant 0 : i32
    %c0_i32_1 = arith.constant 0 : i32
    return %c0_i32, %c0_i32_0 : i32, i32
  }
  func.func @transform_5(%arg0: i32, %arg1: i32, %arg2: i32) -> (i32, i32) {
    %c0_i32 = arith.constant 0 : i32
    %c0_i32_0 = arith.constant 0 : i32
    %c0_i32_1 = arith.constant 0 : i32
    return %c0_i32, %c0_i32_0 : i32, i32
  }
  func.func @transform_6(%arg0: i32, %arg1: i32, %arg2: i32) -> (i32, i32, i32) {
    %c0_i32 = arith.constant 0 : i32
    %c0_i32_0 = arith.constant 0 : i32
    %c0_i32_1 = arith.constant 0 : i32
    return %arg2, %c0_i32, %c0_i32_0 : i32, i32, i32
  }
  func.func @transform_7(%arg0: i32, %arg1: i32, %arg2: i32) -> (i32, i32) {
    %c0_i32 = arith.constant 0 : i32
    %c0_i32_0 = arith.constant 0 : i32
    %c0_i32_1 = arith.constant 0 : i32
    return %c0_i32, %c0_i32_0 : i32, i32
  }
  func.func @transform_8(%arg0: i32, %arg1: i32, %arg2: i32) -> (i32, i32, i32) {
    %c0_i32 = arith.constant 0 : i32
    %c0_i32_0 = arith.constant 0 : i32
    return %arg0, %arg1, %c0_i32 : i32, i32, i32
  }
  func.func @transform_9(%arg0: i32, %arg1: i32, %arg2: i32) -> (i32, i32, i32, i32) {
    %c0_i32 = arith.constant 0 : i32
    %c0_i32_0 = arith.constant 0 : i32
    return %arg0, %arg2, %arg1, %c0_i32 : i32, i32, i32, i32
  }
}

</mosaic_0001>

<llo_original>
// kernel: tpu_custom_call.1
$region0: #{tpu_custom_call.1}
  #allocation0 [shape = 'u32[]', space=smem, size = 0x4, offset = 0x4, fixed_abs, tag = 'smem constant byte address 0x4 - core index']
  #allocation1 [shape = 'u32[144,128]{1,0:T(1,128)}', space=vmem, size = 0x12000, scoped, tag = 'internal scratch']
  #allocation2 [shape = 'f32[8,32]{1,0:T(8,128)}', space=vmem, size = 0x1000, scoped, tag = 'scratch operand']
  %s0 = inlined_call_operand.hbm [shape: f32[2,4,8,8], index: 0, kind: input, shape index: {}]
  %s1 = inlined_call_operand.hbm [shape: f32[2,4,8,8], index: 1, kind: input, shape index: {}]
  %s2 = inlined_call_operand.hbm [shape: f32[2,4,8,8], index: 2, kind: input, shape index: {}]
  %s3 = inlined_call_operand.hbm [shape: f32[8,8], index: 3, kind: input, shape index: {}]
  %s4 = inlined_call_operand.hbm [shape: f32[8,8], index: 4, kind: input, shape index: {}]
  %s5 = inlined_call_operand.vmem [shape: f32[8,8], index: 5, kind: input, shape index: {}]
  %s6 = inlined_call_operand.hbm [shape: f32[4,8,32], index: 6, kind: input, shape index: {}]
  %s7 = inlined_call_operand.vmem [shape: f32[1,32], index: 7, kind: input, shape index: {}]
  %s8 = inlined_call_operand.hbm [shape: f32[2,8,32], index: 8, kind: output, shape index: {0}]
  %s9 = inlined_call_operand.hbm [shape: f32[2,4,8,8], index: 9, kind: output, shape index: {1}]
  %10 = xla_tuple %s8, %s9
  %s11 = sld [smem:[#allocation0]]
  $region105: #{tpu_custom_call.1} parent=0
    _
  %s13 = ssub.s32 1, %s11
  %s14 = scalar_select 0, %s13, %s11
  $region1: #{tpu_custom_call.1} parent=0
    #allocation3 [shape = 'u8[8192]{0}', space=vmem, size = 0x2000, scoped, tag = 'input window, operand 0']
    #allocation4 [shape = 's32[2]{0}', space=sflag, size = 0x8, scoped, tag = 'scoped memory for tpu_custom_call.1']
    #allocation5 [shape = 's32[2]{0}', space=sflag, size = 0x8, scoped, tag = 'scoped memory for tpu_custom_call.1']
    #allocation6 [shape = 'u8[8192]{0}', space=vmem, size = 0x2000, scoped, tag = 'input window, operand 1']
    #allocation7 [shape = 's32[2]{0}', space=sflag, size = 0x8, scoped, tag = 'scoped memory for tpu_custom_call.1']
    #allocation8 [shape = 'u8[8192]{0}', space=vmem, size = 0x2000, scoped, tag = 'input window, operand 2']
    #allocation9 [shape = 'u8[4096]{0}', space=vmem, size = 0x1000, scoped, tag = 'input window, operand 3, single buffered']
    #allocation10 [shape = 's32[1]{0}', space=sflag, size = 0x4, scoped, tag = 'scoped memory for tpu_custom_call.1']
    #allocation11 [shape = 'u8[4096]{0}', space=vmem, size = 0x1000, scoped, tag = 'input window, operand 4, single buffered']
    #allocation12 [shape = 'u8[8192]{0}', space=vmem, size = 0x2000, scoped, tag = 'input window, operand 6']
    #allocation13 [shape = 's32[2]{0}', space=sflag, size = 0x8, scoped, tag = 'scoped memory for tpu_custom_call.1']
    #allocation14 [shape = 'u8[8192]{0}', space=vmem, size = 0x2000, scoped, tag = 'output window, operand 0']
    #allocation15 [shape = 'u8[8192]{0}', space=vmem, size = 0x2000, scoped, tag = 'output window, operand 1']
    #allocation16 [shape = 's32[2]{0}', space=sflag, size = 0x8, scoped, tag = 'scoped memory for tpu_custom_call.1']
    %15 = vsyncpa [#allocation4], 0
    %s16 = scalar_lea.sflag [#allocation4], 1
    %17 = vsyncpa %s16, 0
    %18 = vsyncpa [#allocation7], 0
    %s19 = scalar_lea.sflag [#allocation7], 1
    %20 = vsyncpa %s19, 0
    %21 = vsyncpa [#allocation10], 0
    %22 = vsyncpa [#allocation13], 0
    %s23 = scalar_lea.sflag [#allocation13], 1
    %24 = vsyncpa %s23, 0
    %25 = vsyncpa [#allocation5], 0
    %s26 = scalar_lea.sflag [#allocation5], 1
    %27 = vsyncpa %s26, 0
    %28 = vsyncpa [#allocation16], 0
    %s29 = scalar_lea.sflag [#allocation16], 1
    %30 = vsyncpa %s29, 0
    loop: start=0, step=1, limit=10
    $region2: #{tpu_custom_call.1} parent=1 // loop_pre_header
      _
    $region3: #{tpu_custom_call.1} parent=1 // loop_header
      %s32 = sphi 0, %s36
      %p33 = scmp.ge.s32.totalorder %s32, 10
      %s39 = sphi 0, %s58
      %s40 = sphi 0, %s54
      %s41 = sphi 0, %s50
      %s42 = sphi 0, %s39
      %s43 = sphi 0, %s40
      %s44 = sphi 0, %s41
      %s45 = sphi 0, %s42
      %s46 = sphi 0, %s43
      %s47 = sphi 0, %s44
      %s63 = sphi 0, %s65
      %s66 = sphi 0, %s63
      %s67 = sphi 0, %s66
      %s83 = sphi 0, %s67
      %s91 = sphi 0, %s93
      %s94 = sphi 0, %s91
      %s95 = sphi 0, %s94
      %s111 = sphi 0, %s95
      %s121 = sphi 0, %s123
      %s124 = sphi 0, %s121
      %s125 = sphi 0, %s124
      %s141 = sphi 0, %s125
      %s145 = sphi 0, %s145
      %s147 = sphi 0, %s145
      %s148 = sphi 0, %s147
      %s162 = sphi 0, %s148
      %s166 = sphi 0, %s166
      %s168 = sphi 0, %s166
      %s169 = sphi 0, %s168
      %s183 = sphi 0, %s169
      %s187 = sphi 0, %s187
      %s189 = sphi 0, %s187
      %s190 = sphi 0, %s189
      %s204 = sphi 0, %s190
      %s210 = sphi 0, %s212
      %s213 = sphi 0, %s210
      %s214 = sphi 0, %s213
      %s230 = sphi 0, %s214
      %s234 = sphi 0, %s234
      %s236 = sphi 0, %s234
      %s237 = sphi 0, %s236
      %s251 = sphi 0, %s237
      %s259 = sphi 0, %s261
      %s262 = sphi 0, %s259
      %s263 = sphi 0, %s262
      %s279 = sphi 0, %s263
      %s289 = sphi 0, %s291
      %s292 = sphi 0, %s289
      %s293 = sphi 0, %s292
      %s309 = sphi 0, %s293
    $region4: #{tpu_custom_call.1} parent=1 // loop_header_branch
      %35 = sbr.rel (%p33) target = $region8
    $region5: #{tpu_custom_call.1} parent=1 // loop_body
      %s37 = ssub.s32 %s32, 1
      %s38 = ssub.s32 %s32, 2
      %s48 = sadd.s32 1, %s41
      %p49 = scmp.ge.s32.totalorder %s48, 4
      %s50 = scalar_select %p49, 0, %s48
      %s51 = sadd.s32 1, %s40
      %s52 = scalar_select %p49, %s51, %s40
      %p53 = scmp.ge.s32.totalorder %s52, 1
      %s54 = scalar_select %p53, 0, %s52
      %s55 = sadd.s32 1, %s39
      %s56 = scalar_select %p53, %s55, %s39
      %p57 = scmp.ge.s32.totalorder %s56, 2
      %s58 = scalar_select %p57, 0, %s56
      %s59 = ssub.s32 %s39, %s58
      %s60 = ssub.s32 %s41, %s50
      %s61 = sor.u32 %s59, %s60
      %p62 = scmp.eq.s32.totalorder %s61, 0
      %s64 = sadd.s32 %s63, 1
      %s65 = scalar_select %p62, %s63, %s64
      %p68 = pneg %p62
      %p69 = scmp.eq.s32.totalorder %s32, 7
      %p70 = por %p68, %p69
      %p71 = scmp.ne.s32.totalorder %s63, %s66
      %p72 = scmp.eq.s32.totalorder %s32, 0
      %p73 = por %p71, %p72
      %p74 = scmp.ne.s32.totalorder %s63, %s66
      %p75 = scmp.eq.s32.totalorder %s37, 7
      %p76 = por %p74, %p75
      %p77 = scmp.ne.s32.totalorder %s66, %s67
      %p78 = scmp.eq.s32.totalorder %s37, 0
      %p79 = por %p77, %p78
      %p80 = scmp.ne.s32.totalorder %s66, %s67
      %p81 = scmp.eq.s32.totalorder %s38, 7
      %p82 = por %p80, %p81
      %p84 = scmp.ne.s32.totalorder %s67, %s83
      %p85 = scmp.eq.s32.totalorder %s38, 0
      %p86 = por %p84, %p85
      %s87 = ssub.s32 %s39, %s58
      %s88 = ssub.s32 %s41, %s50
      %s89 = sor.u32 %s87, %s88
      %p90 = scmp.eq.s32.totalorder %s89, 0
      %s92 = sadd.s32 %s91, 1
      %s93 = scalar_select %p90, %s91, %s92
      %p96 = pneg %p90
      %p97 = scmp.eq.s32.totalorder %s32, 7
      %p98 = por %p96, %p97
      %p99 = scmp.ne.s32.totalorder %s91, %s94
      %p100 = scmp.eq.s32.totalorder %s32, 0
      %p101 = por %p99, %p100
      %p102 = scmp.ne.s32.totalorder %s91, %s94
      %p103 = scmp.eq.s32.totalorder %s37, 7
      %p104 = por %p102, %p103
      %p105 = scmp.ne.s32.totalorder %s94, %s95
      %p106 = scmp.eq.s32.totalorder %s37, 0
      %p107 = por %p105, %p106
      %p108 = scmp.ne.s32.totalorder %s94, %s95
      %p109 = scmp.eq.s32.totalorder %s38, 7
      %p110 = por %p108, %p109
      %p112 = scmp.ne.s32.totalorder %s95, %s111
      %p113 = scmp.eq.s32.totalorder %s38, 0
      %p114 = por %p112, %p113
      %s115 = ssub.s32 %s39, %s58
      %s116 = ssub.s32 %s41, %s50
      %s117 = sor.u32 %s115, %s116
      %s118 = ssub.s32 %s40, %s54
      %s119 = sor.u32 %s117, %s118
      %p120 = scmp.eq.s32.totalorder %s119, 0
      %s122 = sadd.s32 %s121, 1
      %s123 = scalar_select %p120, %s121, %s122
      %p126 = pneg %p120
      %p127 = scmp.eq.s32.totalorder %s32, 7
      %p128 = por %p126, %p127
      %p129 = scmp.ne.s32.totalorder %s121, %s124
      %p130 = scmp.eq.s32.totalorder %s32, 0
      %p131 = por %p129, %p130
      %p132 = scmp.ne.s32.totalorder %s121, %s124
      %p133 = scmp.eq.s32.totalorder %s37, 7
      %p134 = por %p132, %p133
      %p135 = scmp.ne.s32.totalorder %s124, %s125
      %p136 = scmp.eq.s32.totalorder %s37, 0
      %p137 = por %p135, %p136
      %p138 = scmp.ne.s32.totalorder %s124, %s125
      %p139 = scmp.eq.s32.totalorder %s38, 7
      %p140 = por %p138, %p139
      %p142 = scmp.ne.s32.totalorder %s125, %s141
      %p143 = scmp.eq.s32.totalorder %s38, 0
      %p144 = por %p142, %p143
      %s146 = sadd.s32 %s145, 1
      %p149 = scmp.eq.s32.totalorder %s32, 7
      %p150 = scmp.ne.s32.totalorder %s145, %s147
      %p151 = scmp.eq.s32.totalorder %s32, 0
      %p152 = por %p150, %p151
      %p153 = scmp.ne.s32.totalorder %s145, %s147
      %p154 = scmp.eq.s32.totalorder %s37, 7
      %p155 = por %p153, %p154
      %p156 = scmp.ne.s32.totalorder %s147, %s148
      %p157 = scmp.eq.s32.totalorder %s37, 0
      %p158 = por %p156, %p157
      %p159 = scmp.ne.s32.totalorder %s147, %s148
      %p160 = scmp.eq.s32.totalorder %s38, 7
      %p161 = por %p159, %p160
      %p163 = scmp.ne.s32.totalorder %s148, %s162
      %p164 = scmp.eq.s32.totalorder %s38, 0
      %p165 = por %p163, %p164
      %s167 = sadd.s32 %s166, 1
      %p170 = scmp.eq.s32.totalorder %s32, 7
      %p171 = scmp.ne.s32.totalorder %s166, %s168
      %p172 = scmp.eq.s32.totalorder %s32, 0
      %p173 = por %p171, %p172
      %p174 = scmp.ne.s32.totalorder %s166, %s168
      %p175 = scmp.eq.s32.totalorder %s37, 7
      %p176 = por %p174, %p175
      %p177 = scmp.ne.s32.totalorder %s168, %s169
      %p178 = scmp.eq.s32.totalorder %s37, 0
      %p179 = por %p177, %p178
      %p180 = scmp.ne.s32.totalorder %s168, %s169
      %p181 = scmp.eq.s32.totalorder %s38, 7
      %p182 = por %p180, %p181
      %p184 = scmp.ne.s32.totalorder %s169, %s183
      %p185 = scmp.eq.s32.totalorder %s38, 0
      %p186 = por %p184, %p185
      %s188 = sadd.s32 %s187, 1
      %p191 = scmp.eq.s32.totalorder %s32, 7
      %p192 = scmp.ne.s32.totalorder %s187, %s189
      %p193 = scmp.eq.s32.totalorder %s32, 0
      %p194 = por %p192, %p193
      %p195 = scmp.ne.s32.totalorder %s187, %s189
      %p196 = scmp.eq.s32.totalorder %s37, 7
      %p197 = por %p195, %p196
      %p198 = scmp.ne.s32.totalorder %s189, %s190
      %p199 = scmp.eq.s32.totalorder %s37, 0
      %p200 = por %p198, %p199
      %p201 = scmp.ne.s32.totalorder %s189, %s190
      %p202 = scmp.eq.s32.totalorder %s38, 7
      %p203 = por %p201, %p202
      %p205 = scmp.ne.s32.totalorder %s190, %s204
      %p206 = scmp.eq.s32.totalorder %s38, 0
      %p207 = por %p205, %p206
      %s208 = ssub.s32 %s41, %s50
      %p209 = scmp.eq.s32.totalorder %s208, 0
      %s211 = sadd.s32 %s210, 1
      %s212 = scalar_select %p209, %s210, %s211
      %p215 = pneg %p209
      %p216 = scmp.eq.s32.totalorder %s32, 7
      %p217 = por %p215, %p216
      %p218 = scmp.ne.s32.totalorder %s210, %s213
      %p219 = scmp.eq.s32.totalorder %s32, 0
      %p220 = por %p218, %p219
      %p221 = scmp.ne.s32.totalorder %s210, %s213
      %p222 = scmp.eq.s32.totalorder %s37, 7
      %p223 = por %p221, %p222
      %p224 = scmp.ne.s32.totalorder %s213, %s214
      %p225 = scmp.eq.s32.totalorder %s37, 0
      %p226 = por %p224, %p225
      %p227 = scmp.ne.s32.totalorder %s213, %s214
      %p228 = scmp.eq.s32.totalorder %s38, 7
      %p229 = por %p227, %p228
      %p231 = scmp.ne.s32.totalorder %s214, %s230
      %p232 = scmp.eq.s32.totalorder %s38, 0
      %p233 = por %p231, %p232
      %s235 = sadd.s32 %s234, 1
      %p238 = scmp.eq.s32.totalorder %s32, 7
      %p239 = scmp.ne.s32.totalorder %s234, %s236
      %p240 = scmp.eq.s32.totalorder %s32, 0
      %p241 = por %p239, %p240
      %p242 = scmp.ne.s32.totalorder %s234, %s236
      %p243 = scmp.eq.s32.totalorder %s37, 7
      %p244 = por %p242, %p243
      %p245 = scmp.ne.s32.totalorder %s236, %s237
      %p246 = scmp.eq.s32.totalorder %s37, 0
      %p247 = por %p245, %p246
      %p248 = scmp.ne.s32.totalorder %s236, %s237
      %p249 = scmp.eq.s32.totalorder %s38, 7
      %p250 = por %p248, %p249
      %p252 = scmp.ne.s32.totalorder %s237, %s251
      %p253 = scmp.eq.s32.totalorder %s38, 0
      %p254 = por %p252, %p253
      %s255 = ssub.s32 %s39, %s58
      %s256 = ssub.s32 %s40, %s54
      %s257 = sor.u32 %s255, %s256
      %p258 = scmp.eq.s32.totalorder %s257, 0
      %s260 = sadd.s32 %s259, 1
      %s261 = scalar_select %p258, %s259, %s260
      %p264 = pneg %p258
      %p265 = scmp.eq.s32.totalorder %s32, 7
      %p266 = por %p264, %p265
      %p267 = scmp.ne.s32.totalorder %s259, %s262
      %p268 = scmp.eq.s32.totalorder %s32, 0
      %p269 = por %p267, %p268
      %p270 = scmp.ne.s32.totalorder %s259, %s262
      %p271 = scmp.eq.s32.totalorder %s37, 7
      %p272 = por %p270, %p271
      %p273 = scmp.ne.s32.totalorder %s262, %s263
      %p274 = scmp.eq.s32.totalorder %s37, 0
      %p275 = por %p273, %p274
      %p276 = scmp.ne.s32.totalorder %s262, %s263
      %p277 = scmp.eq.s32.totalorder %s38, 7
      %p278 = por %p276, %p277
      %p280 = scmp.ne.s32.totalorder %s263, %s279
      %p281 = scmp.eq.s32.totalorder %s38, 0
      %p282 = por %p280, %p281
      %s283 = ssub.s32 %s39, %s58
      %s284 = ssub.s32 %s41, %s50
      %s285 = sor.u32 %s283, %s284
      %s286 = ssub.s32 %s40, %s54
      %s287 = sor.u32 %s285, %s286
      %p288 = scmp.eq.s32.totalorder %s287, 0
      %s290 = sadd.s32 %s289, 1
      %s291 = scalar_select %p288, %s289, %s290
      %p294 = pneg %p288
      %p295 = scmp.eq.s32.totalorder %s32, 7
      %p296 = por %p294, %p295
      %p297 = scmp.ne.s32.totalorder %s289, %s292
      %p298 = scmp.eq.s32.totalorder %s32, 0
      %p299 = por %p297, %p298
      %p300 = scmp.ne.s32.totalorder %s289, %s292
      %p301 = scmp.eq.s32.totalorder %s37, 7
      %p302 = por %p300, %p301
      %p303 = scmp.ne.s32.totalorder %s292, %s293
      %p304 = scmp.eq.s32.totalorder %s37, 0
      %p305 = por %p303, %p304
      %p306 = scmp.ne.s32.totalorder %s292, %s293
      %p307 = scmp.eq.s32.totalorder %s38, 7
      %p308 = por %p306, %p307
      %p310 = scmp.ne.s32.totalorder %s293, %s309
      %p311 = scmp.eq.s32.totalorder %s38, 0
      %p312 = por %p310, %p311
      %p313 = scmp.le.s32.totalorder 1, %s32
      %p314 = scmp.lt.s32.totalorder %s32, 9
      %p315 = pnand %p313, %p314
      %p316 = pneg %p315
      // Predicated region
      $region9: #{tpu_custom_call.1} parent=5 // pred_check
        _
      $region10: #{tpu_custom_call.1} parent=5 // pred_check_branch
        %318 = sbr.rel (%p315) target = $region12
      $region11: #{tpu_custom_call.1} parent=5 // pred_region
        %s319 = ssub.s32 %s32, 1
        // Predicated region
        $region13: #{tpu_custom_call.1} parent=11 // pred_check
          %p320 = pneg %p158
        $region14: #{tpu_custom_call.1} parent=11 // pred_check_branch
          %322 = sbr.rel (%p320) target = $region16
        $region15: #{tpu_custom_call.1} parent=11 // pred_region
          %s324 = ssub.s32 128, 128
          %325 = vsyncadd [#allocation10], %s324
          %s327 = sshll.u32 [#allocation9], 4
          %s328 = int_to_ptr.vmem [resolvable:$true] %s327
          %330 = dma.hbm_to_vmem [thread:$0]  %s3, 128, %s328, [#allocation10]
        $region16: #{tpu_custom_call.1} parent=11 // pred_fallthru
          _
        // Predicated region
        $region17: #{tpu_custom_call.1} parent=11 // pred_check
          %p331 = pneg %p179
        $region18: #{tpu_custom_call.1} parent=11 // pred_check_branch
          %333 = sbr.rel (%p331) target = $region20
        $region19: #{tpu_custom_call.1} parent=11 // pred_region
          %s335 = ssub.s32 128, 128
          %336 = vsyncadd [#allocation10], %s335
          %s338 = sshll.u32 [#allocation11], 4
          %s339 = int_to_ptr.vmem [resolvable:$true] %s338
          %341 = dma.hbm_to_vmem [thread:$0]  %s4, 128, %s339, [#allocation10]
        $region20: #{tpu_custom_call.1} parent=11 // pred_fallthru
          _
        // Predicated region
        $region21: #{tpu_custom_call.1} parent=11 // pred_check
          %p342 = pneg %p200
        $region22: #{tpu_custom_call.1} parent=11 // pred_check_branch
          %344 = sbr.rel (%p342) target = $region24
        $region23: #{tpu_custom_call.1} parent=11 // pred_region
          _
        $region24: #{tpu_custom_call.1} parent=11 // pred_fallthru
          _
        // Predicated region
        $region25: #{tpu_custom_call.1} parent=11 // pred_check
          %p345 = pneg %p247
        $region26: #{tpu_custom_call.1} parent=11 // pred_check_branch
          %347 = sbr.rel (%p345) target = $region28
        $region27: #{tpu_custom_call.1} parent=11 // pred_region
          _
        $region28: #{tpu_custom_call.1} parent=11 // pred_fallthru
          _
      $region12: #{tpu_custom_call.1} parent=5 // pred_fallthru
        _
      %p348 = scmp.lt.s32.totalorder %s32, 8
      // Predicated region
      $region29: #{tpu_custom_call.1} parent=5 // pred_check
        %p349 = pneg %p348
      $region30: #{tpu_custom_call.1} parent=5 // pred_check_branch
        %351 = sbr.rel (%p349) target = $region32
      $region31: #{tpu_custom_call.1} parent=5 // pred_region
        // Predicated region
        $region33: #{tpu_custom_call.1} parent=31 // pred_check
          %p352 = pneg %p73
        $region34: #{tpu_custom_call.1} parent=31 // pred_check_branch
          %354 = sbr.rel (%p352) target = $region36
        $region35: #{tpu_custom_call.1} parent=31 // pred_region
          %s355 = sand.u32 %s63, 1
          %s356 = scalar_lea.sflag [#allocation4], %s355
          %s357 = sand.u32 %s63, 1
          %s358 = smul.addr %s357, 8
          %s359 = scalar_lea.vmem [#allocation3], %s358
          %s361 = ssub.s32 128, 128
          %362 = vsyncadd %s356, %s361
          %s363 = smul.addr %s39, 4
          %s364 = sadd.s32 %s41, %s363
          %s365 = smul.addr %s364, 128
          %s366 = scalar_lea.hbm %s0, %s365
          %s368 = sshll.u32 %s359, 4
          %s369 = int_to_ptr.vmem [resolvable:$true] %s368
          %371 = dma.hbm_to_vmem [thread:$0]  %s366, 128, %s369, %s356
        $region36: #{tpu_custom_call.1} parent=31 // pred_fallthru
          _
        // Predicated region
        $region37: #{tpu_custom_call.1} parent=31 // pred_check
          %p372 = pneg %p101
        $region38: #{tpu_custom_call.1} parent=31 // pred_check_branch
          %374 = sbr.rel (%p372) target = $region40
        $region39: #{tpu_custom_call.1} parent=31 // pred_region
          %s375 = sand.u32 %s32, 1
          %s376 = scalar_lea.sflag [#allocation7], %s375
          %s377 = sand.u32 %s91, 1
          %s378 = smul.addr %s377, 8
          %s379 = scalar_lea.vmem [#allocation6], %s378
          %s381 = ssub.s32 128, 128
          %382 = vsyncadd %s376, %s381
          %s383 = smul.addr %s39, 4
          %s384 = sadd.s32 %s41, %s383
          %s385 = smul.addr %s384, 128
          %s386 = scalar_lea.hbm %s1, %s385
          %s388 = sshll.u32 %s379, 4
          %s389 = int_to_ptr.vmem [resolvable:$true] %s388
          %391 = dma.hbm_to_vmem [thread:$0]  %s386, 128, %s389, %s376
        $region40: #{tpu_custom_call.1} parent=31 // pred_fallthru
          _
        // Predicated region
        $region41: #{tpu_custom_call.1} parent=31 // pred_check
          %p392 = pneg %p131
        $region42: #{tpu_custom_call.1} parent=31 // pred_check_branch
          %394 = sbr.rel (%p392) target = $region44
        $region43: #{tpu_custom_call.1} parent=31 // pred_region
          %s395 = sand.u32 %s32, 1
          %s396 = scalar_lea.sflag [#allocation7], %s395
          %s397 = sand.u32 %s121, 1
          %s398 = smul.addr %s397, 8
          %s399 = scalar_lea.vmem [#allocation8], %s398
          %s401 = ssub.s32 128, 128
          %402 = vsyncadd %s396, %s401
          %s403 = sadd.s32 %s40, %s41
          %s404 = smul.addr %s39, 4
          %s405 = sadd.s32 %s403, %s404
          %s406 = smul.addr %s405, 128
          %s407 = scalar_lea.hbm %s2, %s406
          %s409 = sshll.u32 %s399, 4
          %s410 = int_to_ptr.vmem [resolvable:$true] %s409
          %412 = dma.hbm_to_vmem [thread:$0]  %s407, 128, %s410, %s396
        $region44: #{tpu_custom_call.1} parent=31 // pred_fallthru
          _
        // Predicated region
        $region45: #{tpu_custom_call.1} parent=31 // pred_check
          %p413 = pneg %p220
        $region46: #{tpu_custom_call.1} parent=31 // pred_check_branch
          %415 = sbr.rel (%p413) target = $region48
        $region47: #{tpu_custom_call.1} parent=31 // pred_region
          %s416 = sand.u32 %s210, 1
          %s417 = scalar_lea.sflag [#allocation13], %s416
          %s418 = sand.u32 %s210, 1
          %s419 = smul.addr %s418, 8
          %s420 = scalar_lea.vmem [#allocation12], %s419
          %s422 = ssub.s32 128, 128
          %423 = vsyncadd %s417, %s422
          %s424 = smul.addr %s41, 128
          %s425 = scalar_lea.hbm %s6, %s424
          %s427 = sshll.u32 %s420, 4
          %s428 = int_to_ptr.vmem [resolvable:$true] %s427
          %430 = dma.hbm_to_vmem [thread:$0]  %s425, 128, %s428, %s417
        $region48: #{tpu_custom_call.1} parent=31 // pred_fallthru
          _
      $region32: #{tpu_custom_call.1} parent=5 // pred_fallthru
        _
      %p431 = scmp.le.s32.totalorder 1, %s32
      %p432 = scmp.lt.s32.totalorder %s32, 9
      %p433 = pnand %p431, %p432
      %p434 = pneg %p433
      // Predicated region
      $region49: #{tpu_custom_call.1} parent=5 // pred_check
        _
      $region50: #{tpu_custom_call.1} parent=5 // pred_check_branch
        %436 = sbr.rel (%p433) target = $region52
      $region51: #{tpu_custom_call.1} parent=5 // pred_region
        %s437 = ssub.s32 %s32, 1
        %s438 = sand.u32 %s66, 1
        %s439 = scalar_lea.sflag [#allocation4], %s438
        %s440 = sand.u32 %s66, 1
        %s441 = smul.addr %s440, 8
        %s442 = scalar_lea.vmem [#allocation3], %s441
        // Predicated region
        $region53: #{tpu_custom_call.1} parent=51 // pred_check
          %p443 = pneg %p79
        $region54: #{tpu_custom_call.1} parent=51 // pred_check_branch
          %445 = sbr.rel (%p443) target = $region56
        $region55: #{tpu_custom_call.1} parent=51 // pred_region
          %446 = dma.done %s439, 128
        $region56: #{tpu_custom_call.1} parent=51 // pred_fallthru
          _
        %s447 = sand.u32 %s37, 1
        %s448 = scalar_lea.sflag [#allocation7], %s447
        %s449 = sand.u32 %s94, 1
        %s450 = smul.addr %s449, 8
        %s451 = scalar_lea.vmem [#allocation6], %s450
        // Predicated region
        $region57: #{tpu_custom_call.1} parent=51 // pred_check
          %p452 = pneg %p107
        $region58: #{tpu_custom_call.1} parent=51 // pred_check_branch
          %454 = sbr.rel (%p452) target = $region60
        $region59: #{tpu_custom_call.1} parent=51 // pred_region
          %455 = dma.done %s448, 128
        $region60: #{tpu_custom_call.1} parent=51 // pred_fallthru
          _
        %s456 = sand.u32 %s37, 1
        %s457 = scalar_lea.sflag [#allocation7], %s456
        %s458 = sand.u32 %s124, 1
        %s459 = smul.addr %s458, 8
        %s460 = scalar_lea.vmem [#allocation8], %s459
        // Predicated region
        $region61: #{tpu_custom_call.1} parent=51 // pred_check
          %p461 = pneg %p137
        $region62: #{tpu_custom_call.1} parent=51 // pred_check_branch
          %463 = sbr.rel (%p461) target = $region64
        $region63: #{tpu_custom_call.1} parent=51 // pred_region
          %464 = dma.done %s457, 128
        $region64: #{tpu_custom_call.1} parent=51 // pred_fallthru
          _
        // Predicated region
        $region65: #{tpu_custom_call.1} parent=51 // pred_check
          %p465 = pneg %p158
        $region66: #{tpu_custom_call.1} parent=51 // pred_check_branch
          %467 = sbr.rel (%p465) target = $region68
        $region67: #{tpu_custom_call.1} parent=51 // pred_region
          %468 = dma.done [#allocation10], 128
        $region68: #{tpu_custom_call.1} parent=51 // pred_fallthru
          _
        // Predicated region
        $region69: #{tpu_custom_call.1} parent=51 // pred_check
          %p469 = pneg %p179
        $region70: #{tpu_custom_call.1} parent=51 // pred_check_branch
          %471 = sbr.rel (%p469) target = $region72
        $region71: #{tpu_custom_call.1} parent=51 // pred_region
          %472 = dma.done [#allocation10], 128
        $region72: #{tpu_custom_call.1} parent=51 // pred_fallthru
          _
        %s473 = sand.u32 %s213, 1
        %s474 = scalar_lea.sflag [#allocation13], %s473
        %s475 = sand.u32 %s213, 1
        %s476 = smul.addr %s475, 8
        %s477 = scalar_lea.vmem [#allocation12], %s476
        // Predicated region
        $region73: #{tpu_custom_call.1} parent=51 // pred_check
          %p478 = pneg %p226
        $region74: #{tpu_custom_call.1} parent=51 // pred_check_branch
          %480 = sbr.rel (%p478) target = $region76
        $region75: #{tpu_custom_call.1} parent=51 // pred_region
          %481 = dma.done %s474, 128
        $region76: #{tpu_custom_call.1} parent=51 // pred_fallthru
          _
        %s482 = sand.u32 %s66, 1
        %s483 = scalar_lea.sflag [#allocation4], %s482
        %s484 = sand.u32 %s66, 1
        %s485 = smul.addr %s484, 8
        %s486 = scalar_lea.vmem [#allocation3], %s485
        %p487 = pneg %p79
        %p488 = pneg %p76
        %s489 = sand.u32 %s37, 1
        %s490 = scalar_lea.sflag [#allocation7], %s489
        %s491 = sand.u32 %s94, 1
        %s492 = smul.addr %s491, 8
        %s493 = scalar_lea.vmem [#allocation6], %s492
        %p494 = pneg %p107
        %p495 = pneg %p104
        %s496 = sand.u32 %s37, 1
        %s497 = scalar_lea.sflag [#allocation7], %s496
        %s498 = sand.u32 %s124, 1
        %s499 = smul.addr %s498, 8
        %s500 = scalar_lea.vmem [#allocation8], %s499
        %p501 = pneg %p137
        %p502 = pneg %p134
        %p503 = pneg %p158
        %p504 = pneg %p155
        %p505 = pneg %p179
        %p506 = pneg %p176
        %p507 = pneg %p200
        %p508 = pneg %p197
        %s509 = sand.u32 %s213, 1
        %s510 = scalar_lea.sflag [#allocation13], %s509
        %s511 = sand.u32 %s213, 1
        %s512 = smul.addr %s511, 8
        %s513 = scalar_lea.vmem [#allocation12], %s512
        %p514 = pneg %p226
        %p515 = pneg %p223
        %p516 = pneg %p247
        %p517 = pneg %p244
        %p518 = pneg %p275
        %p519 = pneg %p272
        %s520 = sand.u32 %s262, 1
        %s521 = scalar_lea.sflag [#allocation5], %s520
        %s522 = sand.u32 %s262, 1
        %s523 = smul.addr %s522, 8
        %s524 = scalar_lea.vmem [#allocation14], %s523
        %p525 = pneg %p305
        %p526 = pneg %p302
        %s527 = sand.u32 %s292, 1
        %s528 = scalar_lea.sflag [#allocation16], %s527
        %s529 = sand.u32 %s292, 1
        %s530 = smul.addr %s529, 8
        %s531 = scalar_lea.vmem [#allocation15], %s530
        %p533 = scmp.eq.s32.totalorder %s44, 0
        // Predicated region
        $region77: #{tpu_custom_call.1} parent=51 // pred_check
          %p534 = pneg %p533
        $region78: #{tpu_custom_call.1} parent=51 // pred_check_branch
          %536 = sbr.rel (%p534) target = $region80
        $region79: #{tpu_custom_call.1} parent=51 // pred_region
          %vm537 = vcmask 261120
          %538 = vst.msk [vmem:[#allocation2] sm:$0xff] %vm537, 0.0
        $region80: #{tpu_custom_call.1} parent=51 // pred_fallthru
          _
        %v539 = vld [vmem:[%s460] sm:$0xff]
        %v540 = vpack.c.bf16 %v539, %v539
        %v541 = vld [vmem:[%s451] sm:$0xff]
        %v542 = vpack.c.bf16 %v541, %v541
        %v543 = vld [vmem:[%s442] sm:$0xff]
        %v544 = vpack.c.bf16 %v543, %v543
        %v545 = vld [vmem:[%s5] sm:$0xff]
        %v546 = vpack.c.bf16 %v545, %v545
        %vm547 = vcmask 64512
        %v549 = vsel %vm547, %v540, 0
        %vm551 = vcmask 1043456
        %v553 = vsel %vm551, %v546, 0
        %555 = vmatprep.subr.bf16.mxu0 0
        %556 = vmatpush1.bf16.msra.mxu0 0
        %557 = vmatprep.subr.bf16.mxu0 0
        %558 = vmatpush1.bf16.msra.mxu0 0
        %559 = vmatprep.subr.bf16.mxu0 0
        %560 = vmatpush1.bf16.msra.mxu0 0
        %561 = vmatprep.subr.bf16.mxu0 0
        %562 = vmatpush1.bf16.msra.mxu0 0
        %563 = vmatprep.subr.bf16.mxu0 0
        %564 = vmatpush1.bf16.msra.mxu0 0
        %565 = vmatprep.subr.bf16.mxu0 0
        %566 = vmatpush1.bf16.msra.mxu0 0
        %567 = vmatprep.subr.bf16.mxu0 0
        %568 = vmatpush1.bf16.msra.mxu0 0
        %569 = vmatprep.subr.bf16.mxu0 0
        %570 = vmatpush1.bf16.msra.mxu0 %v553
        %571 = vmatprep.subr.bf16.mxu0 0
        %572 = vmatpush2.bf16.msra.mxu0 0
        %573 = vmatprep.subr.bf16.mxu0 0
        %574 = vmatpush2.bf16.msra.mxu0 0
        %575 = vmatprep.subr.bf16.mxu0 0
        %576 = vmatpush2.bf16.msra.mxu0 0
        %577 = vmatprep.subr.bf16.mxu0 0
        %578 = vmatpush2.bf16.msra.mxu0 0
        %579 = vmatprep.subr.bf16.mxu0 0
        %580 = vmatpush2.bf16.msra.mxu0 0
        %581 = vmatprep.subr.bf16.mxu0 0
        %582 = vmatpush2.bf16.msra.mxu0 0
        %583 = vmatprep.subr.bf16.mxu0 0
        %584 = vmatpush2.bf16.msra.mxu0 0
        %585 = vmatprep.subr.bf16.mxu0 0
        %586 = vmatpush2.bf16.msra.mxu0 0
        %587 = vmatprep.mubr.bf16.mxu0 0
        %588 = vmatmul.mubr.bf16.gmra.mxu0 %v549
        %v589 = vpop.f32.mrf.mxu0
        %v590 = vadd.f32 0.0, %v589
        %v591 = vpop.f32.mrf.mxu0
        %v592 = vpop.f32.mrf.mxu0
        %v593 = vpop.f32.mrf.mxu0
        %594 = vdwg.mxu0
        %v595 = vpack.c.bf16 %v590, %v590
        %v596 = vld [vmem:[#allocation11] sm:$0xff]
        %v597 = vpack.c.bf16 %v596, %v596
        %v599 = vsel %vm547, %v542, 0
        %v602 = vsel %vm551, %v597, 0
        %604 = vmatprep.subr.bf16.mxu0 0
        %605 = vmatpush1.bf16.msra.mxu0 0
        %606 = vmatprep.subr.bf16.mxu0 0
        %607 = vmatpush1.bf16.msra.mxu0 0
        %608 = vmatprep.subr.bf16.mxu0 0
        %609 = vmatpush1.bf16.msra.mxu0 0
        %610 = vmatprep.subr.bf16.mxu0 0
        %611 = vmatpush1.bf16.msra.mxu0 0
        %612 = vmatprep.subr.bf16.mxu0 0
        %613 = vmatpush1.bf16.msra.mxu0 0
        %614 = vmatprep.subr.bf16.mxu0 0
        %615 = vmatpush1.bf16.msra.mxu0 0
        %616 = vmatprep.subr.bf16.mxu0 0
        %617 = vmatpush1.bf16.msra.mxu0 0
        %618 = vmatprep.subr.bf16.mxu0 0
        %619 = vmatpush1.bf16.msra.mxu0 %v602
        %620 = vmatprep.subr.bf16.mxu0 0
        %621 = vmatpush2.bf16.msra.mxu0 0
        %622 = vmatprep.subr.bf16.mxu0 0
        %623 = vmatpush2.bf16.msra.mxu0 0
        %624 = vmatprep.subr.bf16.mxu0 0
        %625 = vmatpush2.bf16.msra.mxu0 0
        %626 = vmatprep.subr.bf16.mxu0 0
        %627 = vmatpush2.bf16.msra.mxu0 0
        %628 = vmatprep.subr.bf16.mxu0 0
        %629 = vmatpush2.bf16.msra.mxu0 0
        %630 = vmatprep.subr.bf16.mxu0 0
        %631 = vmatpush2.bf16.msra.mxu0 0
        %632 = vmatprep.subr.bf16.mxu0 0
        %633 = vmatpush2.bf16.msra.mxu0 0
        %634 = vmatprep.subr.bf16.mxu0 0
        %635 = vmatpush2.bf16.msra.mxu0 0
        %636 = vmatprep.mubr.bf16.mxu0 0
        %637 = vmatmul.mubr.bf16.gmra.mxu0 %v599
        %v638 = vpop.f32.mrf.mxu0
        %v639 = vadd.f32 0.0, %v638
        %v640 = vpop.f32.mrf.mxu0
        %v641 = vpop.f32.mrf.mxu0
        %v642 = vpop.f32.mrf.mxu0
        %643 = vdwg.mxu0
        %v644 = vpack.c.bf16 %v639, %v639
        %v645 = vld [vmem:[#allocation9] sm:$0xff]
        %v646 = vpack.c.bf16 %v645, %v645
        %v648 = vsel %vm547, %v544, 0
        %v651 = vsel %vm551, %v646, 0
        %653 = vmatprep.subr.bf16.mxu0 0
        %654 = vmatpush1.bf16.msra.mxu0 0
        %655 = vmatprep.subr.bf16.mxu0 0
        %656 = vmatpush1.bf16.msra.mxu0 0
        %657 = vmatprep.subr.bf16.mxu0 0
        %658 = vmatpush1.bf16.msra.mxu0 0
        %659 = vmatprep.subr.bf16.mxu0 0
        %660 = vmatpush1.bf16.msra.mxu0 0
        %661 = vmatprep.subr.bf16.mxu0 0
        %662 = vmatpush1.bf16.msra.mxu0 0
        %663 = vmatprep.subr.bf16.mxu0 0
        %664 = vmatpush1.bf16.msra.mxu0 0
        %665 = vmatprep.subr.bf16.mxu0 0
        %666 = vmatpush1.bf16.msra.mxu0 0
        %667 = vmatprep.subr.bf16.mxu0 0
        %668 = vmatpush1.bf16.msra.mxu0 %v651
        %669 = vmatprep.subr.bf16.mxu0 0
        %670 = vmatpush2.bf16.msra.mxu0 0
        %671 = vmatprep.subr.bf16.mxu0 0
        %672 = vmatpush2.bf16.msra.mxu0 0
        %673 = vmatprep.subr.bf16.mxu0 0
        %674 = vmatpush2.bf16.msra.mxu0 0
        %675 = vmatprep.subr.bf16.mxu0 0
        %676 = vmatpush2.bf16.msra.mxu0 0
        %677 = vmatprep.subr.bf16.mxu0 0
        %678 = vmatpush2.bf16.msra.mxu0 0
        %679 = vmatprep.subr.bf16.mxu0 0
        %680 = vmatpush2.bf16.msra.mxu0 0
        %681 = vmatprep.subr.bf16.mxu0 0
        %682 = vmatpush2.bf16.msra.mxu0 0
        %683 = vmatprep.subr.bf16.mxu0 0
        %684 = vmatpush2.bf16.msra.mxu0 0
        %685 = vmatprep.mubr.bf16.mxu0 0
        %686 = vmatmul.mubr.bf16.gmra.mxu0 %v648
        %v687 = vpop.f32.mrf.mxu0
        %v688 = vadd.f32 0.0, %v687
        %v689 = vpop.f32.mrf.mxu0
        %v690 = vpop.f32.mrf.mxu0
        %v691 = vpop.f32.mrf.mxu0
        %692 = vdwg.mxu0
        %v693 = vpack.c.bf16 %v688, %v688
        %v695 = vsel %vm547, %v595, 0
        %v698 = vsel %vm547, %v644, 0
        %700 = vmatprep.subr.bf16.mxu0 0
        %701 = vmatpush1.bf16.xpose.msra.mxu0 0
        %702 = vmatprep.subr.bf16.mxu0 0
        %703 = vmatpush1.bf16.xpose.msra.mxu0 0
        %704 = vmatprep.subr.bf16.mxu0 0
        %705 = vmatpush1.bf16.xpose.msra.mxu0 0
        %706 = vmatprep.subr.bf16.mxu0 0
        %707 = vmatpush1.bf16.xpose.msra.mxu0 0
        %708 = vmatprep.subr.bf16.mxu0 0
        %709 = vmatpush1.bf16.xpose.msra.mxu0 0
        %710 = vmatprep.subr.bf16.mxu0 0
        %711 = vmatpush1.bf16.xpose.msra.mxu0 0
        %712 = vmatprep.subr.bf16.mxu0 0
        %713 = vmatpush1.bf16.xpose.msra.mxu0 0
        %714 = vmatprep.subr.bf16.mxu0 0
        %715 = vmatpush1.bf16.xpose.msra.mxu0 %v698
        %716 = vmatprep.subr.bf16.mxu0 0
        %717 = vmatpush2.bf16.xpose.msra.mxu0 0
        %718 = vmatprep.subr.bf16.mxu0 0
        %719 = vmatpush2.bf16.xpose.msra.mxu0 0
        %720 = vmatprep.subr.bf16.mxu0 0
        %721 = vmatpush2.bf16.xpose.msra.mxu0 0
        %722 = vmatprep.subr.bf16.mxu0 0
        %723 = vmatpush2.bf16.xpose.msra.mxu0 0
        %724 = vmatprep.subr.bf16.mxu0 0
        %725 = vmatpush2.bf16.xpose.msra.mxu0 0
        %726 = vmatprep.subr.bf16.mxu0 0
        %727 = vmatpush2.bf16.xpose.msra.mxu0 0
        %728 = vmatprep.subr.bf16.mxu0 0
        %729 = vmatpush2.bf16.xpose.msra.mxu0 0
        %730 = vmatprep.subr.bf16.mxu0 0
        %731 = vmatpush2.bf16.xpose.msra.mxu0 0
        %732 = vmatprep.mubr.bf16.mxu0 0
        %733 = vmatmul.mubr.bf16.gmra.mxu0 %v695
        %v734 = vpop.f32.mrf.mxu0
        %v735 = vadd.f32 0.0, %v734
        %v736 = vpop.f32.mrf.mxu0
        %v737 = vpop.f32.mrf.mxu0
        %v738 = vpop.f32.mrf.mxu0
        %739 = vdwg.mxu0
        %v740 = vsel %vm547, %v735, -inf
        %741 = vmax.xlane.f32.xlu0 %v740
        %v742 = vpop.xlane.xlu0 %741
        %v743 = vsub.f32 %v735, %v742
        %v744 = vmul.f32 %v743, 1.442695
        %v745 = vpow.pop %v744
        %v746 = vsel %vm547, %v745, 0.0
        %747 = vadd.xlane.f32.xlu0 %v746
        %v748 = vpop.xlane.xlu0 %747
        %v749 = vrcp.pop %v748
        %v750 = vmul.f32 %v745, %v749
        %751 = vst.msk [vmem:[%s531] sm:$0xff] %vm547, %v750
        %v752 = vpack.c.bf16 %v750, %v750
        %v754 = vsel %vm547, %v752, 0
        %v757 = vsel %vm551, %v693, 0
        %759 = vmatprep.subr.bf16.mxu0 0
        %760 = vmatpush1.bf16.msra.mxu0 0
        %761 = vmatprep.subr.bf16.mxu0 0
        %762 = vmatpush1.bf16.msra.mxu0 0
        %763 = vmatprep.subr.bf16.mxu0 0
        %764 = vmatpush1.bf16.msra.mxu0 0
        %765 = vmatprep.subr.bf16.mxu0 0
        %766 = vmatpush1.bf16.msra.mxu0 0
        %767 = vmatprep.subr.bf16.mxu0 0
        %768 = vmatpush1.bf16.msra.mxu0 0
        %769 = vmatprep.subr.bf16.mxu0 0
        %770 = vmatpush1.bf16.msra.mxu0 0
        %771 = vmatprep.subr.bf16.mxu0 0
        %772 = vmatpush1.bf16.msra.mxu0 0
        %773 = vmatprep.subr.bf16.mxu0 0
        %774 = vmatpush1.bf16.msra.mxu0 %v757
        %775 = vmatprep.subr.bf16.mxu0 0
        %776 = vmatpush2.bf16.msra.mxu0 0
        %777 = vmatprep.subr.bf16.mxu0 0
        %778 = vmatpush2.bf16.msra.mxu0 0
        %779 = vmatprep.subr.bf16.mxu0 0
        %780 = vmatpush2.bf16.msra.mxu0 0
        %781 = vmatprep.subr.bf16.mxu0 0
        %782 = vmatpush2.bf16.msra.mxu0 0
        %783 = vmatprep.subr.bf16.mxu0 0
        %784 = vmatpush2.bf16.msra.mxu0 0
        %785 = vmatprep.subr.bf16.mxu0 0
        %786 = vmatpush2.bf16.msra.mxu0 0
        %787 = vmatprep.subr.bf16.mxu0 0
        %788 = vmatpush2.bf16.msra.mxu0 0
        %789 = vmatprep.subr.bf16.mxu0 0
        %790 = vmatpush2.bf16.msra.mxu0 0
        %791 = vmatprep.mubr.bf16.mxu0 0
        %792 = vmatmul.mubr.bf16.gmra.mxu0 %v754
        %v793 = vpop.f32.mrf.mxu0
        %v794 = vadd.f32 0.0, %v793
        %v795 = vpop.f32.mrf.mxu0
        %v796 = vpop.f32.mrf.mxu0
        %v797 = vpop.f32.mrf.mxu0
        %798 = vdwg.mxu0
        %v799 = vld [vmem:[#allocation2] sm:$0xff]
        %v800 = vpack.c.bf16 %v794, %v794
        %v801 = vld [vmem:[%s477] sm:$0xff]
        %v802 = vpack.c.bf16 %v801, %v801
        %v804 = vsel %vm547, %v800, 0
        %v807 = vsel %vm551, %v802, 0
        %809 = vmatprep.subr.bf16.mxu0 0
        %810 = vmatpush1.bf16.msra.mxu0 0
        %811 = vmatprep.subr.bf16.mxu0 0
        %812 = vmatpush1.bf16.msra.mxu0 0
        %813 = vmatprep.subr.bf16.mxu0 0
        %814 = vmatpush1.bf16.msra.mxu0 0
        %815 = vmatprep.subr.bf16.mxu0 0
        %816 = vmatpush1.bf16.msra.mxu0 0
        %817 = vmatprep.subr.bf16.mxu0 0
        %818 = vmatpush1.bf16.msra.mxu0 0
        %819 = vmatprep.subr.bf16.mxu0 0
        %820 = vmatpush1.bf16.msra.mxu0 0
        %821 = vmatprep.subr.bf16.mxu0 0
        %822 = vmatpush1.bf16.msra.mxu0 0
        %823 = vmatprep.subr.bf16.mxu0 0
        %824 = vmatpush1.bf16.msra.mxu0 %v807
        %825 = vmatprep.subr.bf16.mxu0 0
        %826 = vmatpush2.bf16.msra.mxu0 0
        %827 = vmatprep.subr.bf16.mxu0 0
        %828 = vmatpush2.bf16.msra.mxu0 0
        %829 = vmatprep.subr.bf16.mxu0 0
        %830 = vmatpush2.bf16.msra.mxu0 0
        %831 = vmatprep.subr.bf16.mxu0 0
        %832 = vmatpush2.bf16.msra.mxu0 0
        %833 = vmatprep.subr.bf16.mxu0 0
        %834 = vmatpush2.bf16.msra.mxu0 0
        %835 = vmatprep.subr.bf16.mxu0 0
        %836 = vmatpush2.bf16.msra.mxu0 0
        %837 = vmatprep.subr.bf16.mxu0 0
        %838 = vmatpush2.bf16.msra.mxu0 0
        %839 = vmatprep.subr.bf16.mxu0 0
        %840 = vmatpush2.bf16.msra.mxu0 0
        %841 = vmatprep.mubr.bf16.mxu0 0
        %842 = vmatmul.mubr.bf16.gmra.mxu0 %v804
        %v843 = vpop.f32.mrf.mxu0
        %v844 = vadd.f32 0.0, %v843
        %v845 = vpop.f32.mrf.mxu0
        %v846 = vpop.f32.mrf.mxu0
        %v847 = vpop.f32.mrf.mxu0
        %848 = vdwg.mxu0
        %v849 = vadd.f32 %v799, %v844
        %vm850 = vcmask 261120
        %851 = vst.msk [vmem:[#allocation2] sm:$0xff] %vm850, %v849
        %p852 = scmp.eq.s32.totalorder %s44, 3
        // Predicated region
        $region81: #{tpu_custom_call.1} parent=51 // pred_check
          %p853 = pneg %p852
        $region82: #{tpu_custom_call.1} parent=51 // pred_check_branch
          %855 = sbr.rel (%p853) target = $region84
        $region83: #{tpu_custom_call.1} parent=51 // pred_region
          %v856 = vld [vmem:[#allocation2] sm:$0xff]
          %v857 = vld [vmem:[%s7] sm:$0x1]
          %v859 = vlaneseq
          %v860 = vshrl.u32 %v859, 7
          %v861 = vsub.s32 0, %v860
          %v862 = vrot.slane %v857, %v861
          %v864 = vadd.f32 %v856, %v862
          %865 = vst.msk [vmem:[%s524] sm:$0xff] %vm850, %v864
        $region84: #{tpu_custom_call.1} parent=51 // pred_fallthru
          _
        %s866 = sand.u32 %s262, 1
        %s867 = scalar_lea.sflag [#allocation5], %s866
        %s868 = sand.u32 %s262, 1
        %s869 = smul.addr %s868, 8
        %s870 = scalar_lea.vmem [#allocation14], %s869
        %s871 = sand.u32 %s292, 1
        %s872 = scalar_lea.sflag [#allocation16], %s871
        %s873 = sand.u32 %s292, 1
        %s874 = smul.addr %s873, 8
        %s875 = scalar_lea.vmem [#allocation15], %s874
        // Predicated region
        $region85: #{tpu_custom_call.1} parent=51 // pred_check
          %p876 = pneg %p272
        $region86: #{tpu_custom_call.1} parent=51 // pred_check_branch
          %878 = sbr.rel (%p876) target = $region88
        $region87: #{tpu_custom_call.1} parent=51 // pred_region
          %s880 = ssub.s32 128, 128
          %881 = vsyncadd %s867, %s880
          %s882 = sadd.s32 %s43, %s42
          %s883 = smul.addr %s882, 128
          %s884 = scalar_lea.hbm %s8, %s883
          %s886 = sshll.u32 %s870, 4
          %s887 = int_to_ptr.vmem [resolvable:$true] %s886
          %889 = dma.vmem_to_hbm [thread:$0]  %s887, 128, %s884, %s867
        $region88: #{tpu_custom_call.1} parent=51 // pred_fallthru
          _
        // Predicated region
        $region89: #{tpu_custom_call.1} parent=51 // pred_check
          %p890 = pneg %p302
        $region90: #{tpu_custom_call.1} parent=51 // pred_check_branch
          %892 = sbr.rel (%p890) target = $region92
        $region91: #{tpu_custom_call.1} parent=51 // pred_region
          %s894 = ssub.s32 128, 128
          %895 = vsyncadd %s872, %s894
          %s896 = sadd.s32 %s43, %s44
          %s897 = smul.addr %s42, 4
          %s898 = sadd.s32 %s896, %s897
          %s899 = smul.addr %s898, 128
          %s900 = scalar_lea.hbm %s9, %s899
          %s902 = sshll.u32 %s875, 4
          %s903 = int_to_ptr.vmem [resolvable:$true] %s902
          %905 = dma.vmem_to_hbm [thread:$0]  %s903, 128, %s900, %s872
        $region92: #{tpu_custom_call.1} parent=51 // pred_fallthru
          _
      $region52: #{tpu_custom_call.1} parent=5 // pred_fallthru
        _
      %p906 = scmp.le.s32.totalorder 2, %s32
      // Predicated region
      $region93: #{tpu_custom_call.1} parent=5 // pred_check
        %p907 = pneg %p906
      $region94: #{tpu_custom_call.1} parent=5 // pred_check_branch
        %909 = sbr.rel (%p907) target = $region96
      $region95: #{tpu_custom_call.1} parent=5 // pred_region
        %s910 = ssub.s32 %s32, 2
        // Predicated region
        $region97: #{tpu_custom_call.1} parent=95 // pred_check
          %p911 = pneg %p278
        $region98: #{tpu_custom_call.1} parent=95 // pred_check_branch
          %913 = sbr.rel (%p911) target = $region100
        $region99: #{tpu_custom_call.1} parent=95 // pred_region
          %s914 = sand.u32 %s263, 1
          %s915 = scalar_lea.sflag [#allocation5], %s914
          %s916 = sand.u32 %s263, 1
          %s917 = smul.addr %s916, 8
          %s918 = scalar_lea.vmem [#allocation14], %s917
          %919 = dma.done %s915, 128
        $region100: #{tpu_custom_call.1} parent=95 // pred_fallthru
          _
        // Predicated region
        $region101: #{tpu_custom_call.1} parent=95 // pred_check
          %p920 = pneg %p308
        $region102: #{tpu_custom_call.1} parent=95 // pred_check_branch
          %922 = sbr.rel (%p920) target = $region104
        $region103: #{tpu_custom_call.1} parent=95 // pred_region
          %s923 = sand.u32 %s293, 1
          %s924 = scalar_lea.sflag [#allocation16], %s923
          %s925 = sand.u32 %s293, 1
          %s926 = smul.addr %s925, 8
          %s927 = scalar_lea.vmem [#allocation15], %s926
          %928 = dma.done %s924, 128
        $region104: #{tpu_custom_call.1} parent=95 // pred_fallthru
          _
      $region96: #{tpu_custom_call.1} parent=5 // pred_fallthru
        _
    $region6: #{tpu_custom_call.1} parent=1 // loop_footer
      %s36 = sadd.s32 1, %s32
    $region7: #{tpu_custom_call.1} parent=1 // loop_footer_branch
      %31 = sbr.rel target = $region3
    $region8: #{tpu_custom_call.1} parent=1 // loop_exit
      _
    %929 = vsyncpa [#allocation4], 1
    %s930 = scalar_lea.sflag [#allocation4], 1
    %931 = vsyncpa %s930, 1
    %932 = vsyncpa [#allocation7], 1
    %s933 = scalar_lea.sflag [#allocation7], 1
    %934 = vsyncpa %s933, 1
    %935 = vsyncpa [#allocation10], 1
    %936 = vsyncpa [#allocation13], 1
    %s937 = scalar_lea.sflag [#allocation13], 1
    %938 = vsyncpa %s937, 1
    %939 = vsyncpa [#allocation5], 1
    %s940 = scalar_lea.sflag [#allocation5], 1
    %941 = vsyncpa %s940, 1
    %942 = vsyncpa [#allocation16], 1
    %s943 = scalar_lea.sflag [#allocation16], 1
    %944 = vsyncpa %s943, 1

</llo_original>
